<compile_context>
chip_gen: v7x
topology: tpu7x:2x2x1
jax: 0.10.0
libtpu: 0.0.40
codegen_flags: <defaults>
</compile_context>

<pallas_src>
import functools
import numpy as np
import jax
import jax.numpy as jnp
from jax.experimental import pallas as pl
from jax.experimental.pallas import tpu as pltpu


# ----------------------------------------------------------------------------- #
# Compiler params: query VMEM capacity per generation, shard both grid axes.
# ----------------------------------------------------------------------------- #

def _compiler_params(n_grid_axes):
    try:
        cap = int(pltpu.get_tpu_info().vmem_capacity_bytes)
    except Exception:
        cap = 64 * 1024 * 1024          # conservative fallback (v7x physical VMEM)
    return pltpu.CompilerParams(
        dimension_semantics=("parallel",) * n_grid_axes,
        vmem_limit_bytes=max(32 * 1024 * 1024, (cap * 3) // 4),
    )


def _pick_row_tile(rows, cap_rows=4096):
    """Largest divisor of `rows` that is a multiple of 8 and <= cap_rows (or `rows` itself)."""
    if rows <= cap_rows:
        return rows
    t = (cap_rows // 8) * 8
    while t >= 8:
        if rows % t == 0:
            return t
        t -= 8
    return rows


# ----------------------------------------------------------------------------- #
# Kernel
# ----------------------------------------------------------------------------- #

def _datanet_kernel(r_tile, x_ref, sty_ref, mask_ref, alpha_ref, r0_ref, r1_ref,
                    branch_ref, o_ref):
    # x_ref / sty_ref / o_ref : (1, r_tile, LANE) f32 blocks (lane-dense flattened c,h,w).
    # mask_ref                : (1, R, LANE) f32, grid-resident ::sf sampling mask in {0,1}.
    # alpha / r0 / r1         : (N,) f32 SMEM scalars (alpha, 1/alpha, 1/(alpha+1)).
    # branch                  : (N,) int32 SMEM (1: sigma>0, 0: sigma==0, -1: otherwise).
    b = pl.program_id(0)
    s = pl.program_id(1)
    start = pl.multiple_of(s * r_tile, r_tile)
    m = mask_ref[:, pl.ds(start, r_tile), :]                 # (1, r_tile, LANE)
    branch = branch_ref[b]

    # sigma > 0 : (STy + alpha*x) / (alpha + m) — divide replaced by scalar reciprocals
    # selected by the 0/1 mask (exact: alpha + m is exactly alpha or alpha+1).
    @pl.when(branch == 1)
    def _():
        alpha = alpha_ref[b]
        r0 = r0_ref[b]                                       # 1 / alpha
        r1 = r1_ref[b]                                       # 1 / (alpha + 1)
        inv = r0 + m * (r1 - r0)
        o_ref[...] = ((sty_ref[...] + alpha * x_ref[...]) * inv).astype(o_ref.dtype)

    # sigma == 0 : x with ::sf samples replaced by STy.
    @pl.when(branch == 0)
    def _():
        x = x_ref[...]
        o_ref[...] = (x + m * (sty_ref[...] - x)).astype(o_ref.dtype)

    # sigma < 0 (or anything else) : zeros, matching torch's untouched res = zeros_like(x).
    @pl.when(branch < 0)
    def _():
        o_ref[...] = jnp.zeros_like(o_ref)


# ----------------------------------------------------------------------------- #
# Wrapper
# ----------------------------------------------------------------------------- #

def datanet_forward(x, STy, alpha, sf, sigma):
    """Pallas TPU DataNet.forward.

    x, STy : (N, C, H, W) float32
    alpha  : per-sample scalar, reshapeable to (N,)
    sf     : int super-resolution factor (static)
    sigma  : per-sample scalar, reshapeable to (N,)
    Returns (N, C, H, W) float32.
    """
    N, C, H, W = x.shape
    L = C * H * W

    # ::sf sampling mask over (H, W), replicated across channels and flattened in the same
    # channel-major (c, h, w) order as x. Computed once; kept VMEM-resident by the kernel.
    hi = jnp.arange(H)[:, None]
    wi = jnp.arange(W)[None, :]
    mask_hw = ((hi % sf == 0) & (wi % sf == 0)).astype(jnp.float32).reshape(-1)   # (H*W,)
    mask_flat = jnp.tile(mask_hw, (C,))                                           # (L,)

    # Lane-dense view: (N, L/128, 128) when possible (contiguous reshape, no copy);
    # otherwise fall back to (N, C*H, W) whole-sample blocks.
    if L % 128 == 0:
        LANE = 128
        R = L // LANE
        r_tile = _pick_row_tile(R)
    else:
        LANE = W
        R = C * H
        r_tile = R
    assert R % r_tile == 0

    xv = x.reshape(N, R, LANE).astype(jnp.float32)
    styv = STy.reshape(N, R, LANE).astype(jnp.float32)
    maskv = mask_flat.reshape(1, R, LANE)

    alpha1 = alpha.reshape(N).astype(jnp.float32)
    sigma1 = sigma.reshape(N).astype(jnp.float32)
    # Host-precomputed per-sample scalars: reciprocals for the pos branch and the branch code.
    r0 = 1.0 / alpha1
    r1 = 1.0 / (alpha1 + 1.0)
    branch = jnp.where(sigma1 > 0.0, 1, jnp.where(sigma1 == 0.0, 0, -1)).astype(jnp.int32)

    grid = (N, R // r_tile)
    out = pl.pallas_call(
        functools.partial(_datanet_kernel, r_tile),
        out_shape=jax.ShapeDtypeStruct((N, R, LANE), jnp.float32),
        grid=grid,
        in_specs=[
            pl.BlockSpec((1, r_tile, LANE), lambda b, s: (b, s, 0)),   # x
            pl.BlockSpec((1, r_tile, LANE), lambda b, s: (b, s, 0)),   # STy
            pl.BlockSpec((1, R, LANE), lambda b, s: (0, 0, 0)),        # resident ::sf mask
            pl.BlockSpec(memory_space=pltpu.MemorySpace.SMEM),         # alpha
            pl.BlockSpec(memory_space=pltpu.MemorySpace.SMEM),         # 1/alpha
            pl.BlockSpec(memory_space=pltpu.MemorySpace.SMEM),         # 1/(alpha+1)
            pl.BlockSpec(memory_space=pltpu.MemorySpace.SMEM),         # branch code
        ],
        out_specs=pl.BlockSpec((1, r_tile, LANE), lambda b, s: (b, s, 0)),
        compiler_params=_compiler_params(len(grid)),
    )(xv, styv, maskv, alpha1, r0, r1, branch)
    return out.reshape(N, C, H, W)


# ----------------------------------------------------------------------------- #
# Pure-JAX reference (mirrors the PyTorch DataNet semantics)
# ----------------------------------------------------------------------------- #

def datanet_reference(x, STy, alpha, sf, sigma):
    N, C, H, W = x.shape
    hi = jnp.arange(H)[:, None]
    wi = jnp.arange(W)[None, :]
    m = ((hi % sf == 0) & (wi % sf == 0)).astype(jnp.float32)[None, None]
    a = alpha.reshape(N, 1, 1, 1).astype(jnp.float32)
    s = sigma.reshape(N, 1, 1, 1).astype(jnp.float32)
    pos = (STy + a * x) / (a + m)                 # forward_pos
    zer = x * (1.0 - m) + STy * m                 # forward_zer
    return jnp.where(s > 0.0, pos, jnp.where(s == 0.0, zer, jnp.zeros_like(x)))


# ----------------------------------------------------------------------------- #
# Main
# ----------------------------------------------------------------------------- #

if __name__ == "__main__":
    N, C, H, W = 3, 4, 16, 16
    sf = 2

    key = jax.random.PRNGKey(0)
    kx, ky, ka = jax.random.split(key, 3)

    x = jax.random.normal(kx, (N, C, H, W), jnp.float32)
    # STy = S^T y : zero-filled upsampling of a low-res measurement (nonzero only at ::sf,::sf).
    y = jax.random.normal(ky, (N, C, H // sf, W // sf), jnp.float32)
    STy = jnp.zeros((N, C, H, W), jnp.float32).at[:, :, ::sf, ::sf].set(y)
    alpha = 0.1 + jax.random.uniform(ka, (N, 1, 1, 1), jnp.float32)
    # Exercise all three branches: sigma == 0 (zer), sigma > 0 (pos), sigma < 0 (zeros).
    sigma = jnp.array([0.0, 0.05, -1.0], jnp.float32).reshape(N, 1, 1, 1)

    fwd = jax.jit(datanet_forward, static_argnums=(3,))
    out = jax.block_until_ready(fwd(x, STy, alpha, sf, sigma))
    ref = datanet_reference(x, STy, alpha, sf, sigma)

    assert out.shape == (N, C, H, W), out.shape
    assert bool(jnp.all(jnp.isfinite(out)))
    np.testing.assert_allclose(np.asarray(out), np.asarray(ref), rtol=1e-5, atol=1e-5)
    print("KERNEL_OK")
</pallas_src>

<mosaic_0001>
module attributes {stable_mosaic.version = 11 : i64} {
  func.func @_datanet_kernel(%arg0: i32, %arg1: i32, %arg2: memref<1x8x128xf32, #tpu.memory_space<vmem>>, %arg3: memref<1x8x128xf32, #tpu.memory_space<vmem>>, %arg4: memref<1x8x128xf32, #tpu.memory_space<vmem>>, %arg5: memref<3xf32, #tpu.memory_space<smem>>, %arg6: memref<3xf32, #tpu.memory_space<smem>>, %arg7: memref<3xf32, #tpu.memory_space<smem>>, %arg8: memref<3xi32, #tpu.memory_space<smem>>, %arg9: memref<1x8x128xf32, #tpu.memory_space<vmem>>) attributes {dimension_semantics = [#tpu.dimension_semantics<parallel>, #tpu.dimension_semantics<parallel>], iteration_bounds = array<i64: 3, 1>, scalar_prefetch = 0 : i64, scratch_operands = 0 : i64, tpu.core_type = #tpu.core_type<tc>, window_params = [{transform_indices = @transform_0, window_bounds = array<i64: 1, 8, 128>}, {transform_indices = @transform_1, window_bounds = array<i64: 1, 8, 128>}, {pipeline_mode = #tpu.pipeline_mode<synchronous>, transform_indices = @transform_2, window_bounds = array<i64: 1, 8, 128>}, {transform_indices = @transform_3, window_bounds = array<i64: 3>}, {transform_indices = @transform_4, window_bounds = array<i64: 3>}, {transform_indices = @transform_5, window_bounds = array<i64: 3>}, {transform_indices = @transform_6, window_bounds = array<i64: 3>}, {transform_indices = @transform_7, window_bounds = array<i64: 1, 8, 128>}]} {
    %c8_i32 = arith.constant 8 : i32
    %0 = arith.muli %arg1, %c8_i32 : i32
    %1 = tpu.assume_multiple %0, 8 : i32
    %c0 = arith.constant 0 : index
    %2 = arith.index_cast %1 : i32 to index
    %c0_0 = arith.constant 0 : index
    %3 = vector.load %arg4[%c0, %2, %c0_0] : memref<1x8x128xf32, #tpu.memory_space<vmem>>, vector<1x8x128xf32>
    %4 = arith.index_cast %arg0 : i32 to index
    %5 = memref.load %arg8[%4] : memref<3xi32, #tpu.memory_space<smem>>
    %c1_i32 = arith.constant 1 : i32
    %6 = arith.cmpi eq, %5, %c1_i32 : i32
    %7 = arith.extui %6 : i1 to i32
    %c0_i32 = arith.constant 0 : i32
    %8 = arith.cmpi ne, %7, %c0_i32 : i32
    scf.if %8 {
      %15 = arith.index_cast %arg0 : i32 to index
      %16 = memref.load %arg5[%15] : memref<3xf32, #tpu.memory_space<smem>>
      %17 = arith.index_cast %arg0 : i32 to index
      %18 = memref.load %arg6[%17] : memref<3xf32, #tpu.memory_space<smem>>
      %19 = arith.index_cast %arg0 : i32 to index
      %20 = memref.load %arg7[%19] : memref<3xf32, #tpu.memory_space<smem>>
      %21 = arith.subf %20, %18 : f32
      %22 = vector.broadcast %21 : f32 to vector<1x8x128xf32>
      %23 = arith.mulf %3, %22 : vector<1x8x128xf32>
      %24 = vector.broadcast %18 : f32 to vector<1x8x128xf32>
      %25 = arith.addf %24, %23 : vector<1x8x128xf32>
      %c0_5 = arith.constant 0 : index
      %c0_6 = arith.constant 0 : index
      %c0_7 = arith.constant 0 : index
      %26 = vector.load %arg3[%c0_5, %c0_6, %c0_7] : memref<1x8x128xf32, #tpu.memory_space<vmem>>, vector<1x8x128xf32>
      %c0_8 = arith.constant 0 : index
      %c0_9 = arith.constant 0 : index
      %c0_10 = arith.constant 0 : index
      %27 = vector.load %arg2[%c0_8, %c0_9, %c0_10] : memref<1x8x128xf32, #tpu.memory_space<vmem>>, vector<1x8x128xf32>
      %28 = vector.broadcast %16 : f32 to vector<1x8x128xf32>
      %29 = arith.mulf %28, %27 : vector<1x8x128xf32>
      %30 = arith.addf %26, %29 : vector<1x8x128xf32>
      %31 = arith.mulf %30, %25 : vector<1x8x128xf32>
      %c0_11 = arith.constant 0 : index
      %c0_12 = arith.constant 0 : index
      %c0_13 = arith.constant 0 : index
      %32 = vector.load %arg9[%c0_11, %c0_12, %c0_13] : memref<1x8x128xf32, #tpu.memory_space<vmem>>, vector<1x8x128xf32>
      tpu.vector_store %arg9[%c0_11, %c0_12, %c0_13], %31 {strides = array<i32>} : memref<1x8x128xf32, #tpu.memory_space<vmem>>, vector<1x8x128xf32>,
    } else {
    }
    %c0_i32_1 = arith.constant 0 : i32
    %9 = arith.cmpi eq, %5, %c0_i32_1 : i32
    %10 = arith.extui %9 : i1 to i32
    %c0_i32_2 = arith.constant 0 : i32
    %11 = arith.cmpi ne, %10, %c0_i32_2 : i32
    scf.if %11 {
      %c0_5 = arith.constant 0 : index
      %c0_6 = arith.constant 0 : index
      %c0_7 = arith.constant 0 : index
      %15 = vector.load %arg2[%c0_5, %c0_6, %c0_7] : memref<1x8x128xf32, #tpu.memory_space<vmem>>, vector<1x8x128xf32>
      %c0_8 = arith.constant 0 : index
      %c0_9 = arith.constant 0 : index
      %c0_10 = arith.constant 0 : index
      %16 = vector.load %arg3[%c0_8, %c0_9, %c0_10] : memref<1x8x128xf32, #tpu.memory_space<vmem>>, vector<1x8x128xf32>
      %17 = arith.subf %16, %15 : vector<1x8x128xf32>
      %18 = arith.mulf %3, %17 : vector<1x8x128xf32>
      %19 = arith.addf %15, %18 : vector<1x8x128xf32>
      %c0_11 = arith.constant 0 : index
      %c0_12 = arith.constant 0 : index
      %c0_13 = arith.constant 0 : index
      %20 = vector.load %arg9[%c0_11, %c0_12, %c0_13] : memref<1x8x128xf32, #tpu.memory_space<vmem>>, vector<1x8x128xf32>
      tpu.vector_store %arg9[%c0_11, %c0_12, %c0_13], %19 {strides = array<i32>} : memref<1x8x128xf32, #tpu.memory_space<vmem>>, vector<1x8x128xf32>,
    } else {
    }
    %c0_i32_3 = arith.constant 0 : i32
    %12 = arith.cmpi slt, %5, %c0_i32_3 : i32
    %13 = arith.extui %12 : i1 to i32
    %c0_i32_4 = arith.constant 0 : i32
    %14 = arith.cmpi ne, %13, %c0_i32_4 : i32
    scf.if %14 {
      %cst = arith.constant 0.000000e+00 : f32
      %15 = vector.broadcast %cst : f32 to vector<1x8x128xf32>
      %c0_5 = arith.constant 0 : index
      %c0_6 = arith.constant 0 : index
      %c0_7 = arith.constant 0 : index
      %16 = vector.load %arg9[%c0_5, %c0_6, %c0_7] : memref<1x8x128xf32, #tpu.memory_space<vmem>>, vector<1x8x128xf32>
      tpu.vector_store %arg9[%c0_5, %c0_6, %c0_7], %15 {strides = array<i32>} : memref<1x8x128xf32, #tpu.memory_space<vmem>>, vector<1x8x128xf32>,
    } else {
    }
    return
  }
  func.func @transform_0(%arg0: i32, %arg1: i32) -> (i32, i32, i32) {
    %c0_i32 = arith.constant 0 : i32
    %c0_i32_0 = arith.constant 0 : i32
    return %arg0, %arg1, %c0_i32 : i32, i32, i32
  }
  func.func @transform_1(%arg0: i32, %arg1: i32) -> (i32, i32, i32) {
    %c0_i32 = arith.constant 0 : i32
    %c0_i32_0 = arith.constant 0 : i32
    return %arg0, %arg1, %c0_i32 : i32, i32, i32
  }
  func.func @transform_2(%arg0: i32, %arg1: i32) -> (i32, i32, i32) {
    %c0_i32 = arith.constant 0 : i32
    %c0_i32_0 = arith.constant 0 : i32
    %c0_i32_1 = arith.constant 0 : i32
    %c0_i32_2 = arith.constant 0 : i32
    return %c0_i32, %c0_i32_0, %c0_i32_1 : i32, i32, i32
  }
  func.func @transform_3(%arg0: i32, %arg1: i32) -> i32 {
    %c0_i32 = arith.constant 0 : i32
    %c0_i32_0 = arith.constant 0 : i32
    return %c0_i32 : i32
  }
  func.func @transform_4(%arg0: i32, %arg1: i32) -> i32 {
    %c0_i32 = arith.constant 0 : i32
    %c0_i32_0 = arith.constant 0 : i32
    return %c0_i32 : i32
  }
  func.func @transform_5(%arg0: i32, %arg1: i32) -> i32 {
    %c0_i32 = arith.constant 0 : i32
    %c0_i32_0 = arith.constant 0 : i32
    return %c0_i32 : i32
  }
  func.func @transform_6(%arg0: i32, %arg1: i32) -> i32 {
    %c0_i32 = arith.constant 0 : i32
    %c0_i32_0 = arith.constant 0 : i32
    return %c0_i32 : i32
  }
  func.func @transform_7(%arg0: i32, %arg1: i32) -> (i32, i32, i32) {
    %c0_i32 = arith.constant 0 : i32
    %c0_i32_0 = arith.constant 0 : i32
    return %arg0, %arg1, %c0_i32 : i32, i32, i32
  }
}

</mosaic_0001>

<llo_original>
// kernel: datanet_forward.1
$region0: #{datanet_forward.1}
  #allocation0 [shape = 'u32[]', space=smem, size = 0x4, offset = 0x4, fixed_abs, tag = 'smem constant byte address 0x4 - core index']
  #allocation1 [shape = 'u32[144,128]{1,0:T(1,128)}', space=vmem, size = 0x12000, scoped, tag = 'internal scratch']
  %s0 = inlined_call_operand.vmem [shape: f32[3,8,128], index: 0, kind: input, shape index: {}]
  %s1 = inlined_call_operand.vmem [shape: f32[3,8,128], index: 1, kind: input, shape index: {}]
  %s2 = inlined_call_operand.vmem [shape: f32[1,8,128], index: 2, kind: input, shape index: {}]
  %s3 = inlined_call_operand.vmem [shape: f32[3], index: 3, kind: input, shape index: {}]
  %s4 = inlined_call_operand.vmem [shape: f32[3], index: 4, kind: input, shape index: {}]
  %s5 = inlined_call_operand.vmem [shape: f32[3], index: 5, kind: input, shape index: {}]
  %s6 = inlined_call_operand.vmem [shape: s32[3], index: 6, kind: input, shape index: {}]
  %s7 = inlined_call_operand.vmem [shape: f32[3,8,128], index: 7, kind: output, shape index: {}]
  %s8 = sld [smem:[#allocation0]]
  $region89: #{datanet_forward.1} parent=0
    _
  %s10 = ssub.s32 1, %s8
  %s11 = scalar_select 0, %s10, %s8
  $region1: #{datanet_forward.1} parent=0
    #allocation2 [shape = 'u8[512]{0}', space=smem, size = 0x200, scoped, tag = 'input window, operand 3, single buffered']
    #allocation3 [shape = 's32[2]{0}', space=sflag, size = 0x8, scoped, tag = 'scoped memory for datanet_forward.1']
    #allocation4 [shape = 'u8[512]{0}', space=smem, size = 0x200, scoped, tag = 'input window, operand 4, single buffered']
    #allocation5 [shape = 's32[1]{0}', space=sflag, size = 0x4, scoped, tag = 'scoped memory for datanet_forward.1']
    #allocation6 [shape = 'u8[512]{0}', space=smem, size = 0x200, scoped, tag = 'input window, operand 5, single buffered']
    #allocation7 [shape = 'u8[512]{0}', space=smem, size = 0x200, scoped, tag = 'input window, operand 6, single buffered']
    #allocation8 [shape = 's32[1]{0}', space=sflag, size = 0x4, scoped, tag = 'scoped memory for datanet_forward.1']
    %12 = vsyncpa [#allocation3], 0
    %13 = vsyncpa [#allocation5], 0
    %14 = vsyncpa [#allocation8], 0
    loop: start=0, step=1, limit=5
    $region2: #{datanet_forward.1} parent=1 // loop_pre_header
      _
    $region3: #{datanet_forward.1} parent=1 // loop_header
      %s16 = sphi 0, %s20
      %p17 = scmp.ge.s32.totalorder %s16, 5
      %s23 = sphi 0, %s35
      %s24 = sphi 0, %s31
      %s25 = sphi 0, %s23
      %s26 = sphi 0, %s24
      %s27 = sphi 0, %s25
      %s28 = sphi 0, %s26
      %s40 = sphi 0, %s42
      %s43 = sphi 0, %s40
      %s44 = sphi 0, %s43
      %s60 = sphi 0, %s44
      %s68 = sphi 0, %s70
      %s71 = sphi 0, %s68
      %s72 = sphi 0, %s71
      %s88 = sphi 0, %s72
      %s92 = sphi 0, %s92
      %s94 = sphi 0, %s92
      %s95 = sphi 0, %s94
      %s109 = sphi 0, %s95
      %s113 = sphi 0, %s113
      %s115 = sphi 0, %s113
      %s116 = sphi 0, %s115
      %s130 = sphi 0, %s116
      %s134 = sphi 0, %s134
      %s136 = sphi 0, %s134
      %s137 = sphi 0, %s136
      %s151 = sphi 0, %s137
      %s155 = sphi 0, %s155
      %s157 = sphi 0, %s155
      %s158 = sphi 0, %s157
      %s172 = sphi 0, %s158
      %s176 = sphi 0, %s176
      %s178 = sphi 0, %s176
      %s179 = sphi 0, %s178
      %s193 = sphi 0, %s179
      %s201 = sphi 0, %s203
      %s204 = sphi 0, %s201
      %s205 = sphi 0, %s204
      %s221 = sphi 0, %s205
    $region4: #{datanet_forward.1} parent=1 // loop_header_branch
      %19 = sbr.rel (%p17) target = $region8
    $region5: #{datanet_forward.1} parent=1 // loop_body
      %s21 = ssub.s32 %s16, 1
      %s22 = ssub.s32 %s16, 2
      %s29 = sadd.s32 1, %s24
      %p30 = scmp.ge.s32.totalorder %s29, 1
      %s31 = scalar_select %p30, 0, %s29
      %s32 = sadd.s32 1, %s23
      %s33 = scalar_select %p30, %s32, %s23
      %p34 = scmp.ge.s32.totalorder %s33, 3
      %s35 = scalar_select %p34, 0, %s33
      %s36 = ssub.s32 %s23, %s35
      %s37 = ssub.s32 %s24, %s31
      %s38 = sor.u32 %s36, %s37
      %p39 = scmp.eq.s32.totalorder %s38, 0
      %s41 = sadd.s32 %s40, 1
      %s42 = scalar_select %p39, %s40, %s41
      %p45 = pneg %p39
      %p46 = scmp.eq.s32.totalorder %s16, 2
      %p47 = por %p45, %p46
      %p48 = scmp.ne.s32.totalorder %s40, %s43
      %p49 = scmp.eq.s32.totalorder %s16, 0
      %p50 = por %p48, %p49
      %p51 = scmp.ne.s32.totalorder %s40, %s43
      %p52 = scmp.eq.s32.totalorder %s21, 2
      %p53 = por %p51, %p52
      %p54 = scmp.ne.s32.totalorder %s43, %s44
      %p55 = scmp.eq.s32.totalorder %s21, 0
      %p56 = por %p54, %p55
      %p57 = scmp.ne.s32.totalorder %s43, %s44
      %p58 = scmp.eq.s32.totalorder %s22, 2
      %p59 = por %p57, %p58
      %p61 = scmp.ne.s32.totalorder %s44, %s60
      %p62 = scmp.eq.s32.totalorder %s22, 0
      %p63 = por %p61, %p62
      %s64 = ssub.s32 %s23, %s35
      %s65 = ssub.s32 %s24, %s31
      %s66 = sor.u32 %s64, %s65
      %p67 = scmp.eq.s32.totalorder %s66, 0
      %s69 = sadd.s32 %s68, 1
      %s70 = scalar_select %p67, %s68, %s69
      %p73 = pneg %p67
      %p74 = scmp.eq.s32.totalorder %s16, 2
      %p75 = por %p73, %p74
      %p76 = scmp.ne.s32.totalorder %s68, %s71
      %p77 = scmp.eq.s32.totalorder %s16, 0
      %p78 = por %p76, %p77
      %p79 = scmp.ne.s32.totalorder %s68, %s71
      %p80 = scmp.eq.s32.totalorder %s21, 2
      %p81 = por %p79, %p80
      %p82 = scmp.ne.s32.totalorder %s71, %s72
      %p83 = scmp.eq.s32.totalorder %s21, 0
      %p84 = por %p82, %p83
      %p85 = scmp.ne.s32.totalorder %s71, %s72
      %p86 = scmp.eq.s32.totalorder %s22, 2
      %p87 = por %p85, %p86
      %p89 = scmp.ne.s32.totalorder %s72, %s88
      %p90 = scmp.eq.s32.totalorder %s22, 0
      %p91 = por %p89, %p90
      %s93 = sadd.s32 %s92, 1
      %p96 = scmp.eq.s32.totalorder %s16, 2
      %p97 = scmp.ne.s32.totalorder %s92, %s94
      %p98 = scmp.eq.s32.totalorder %s16, 0
      %p99 = por %p97, %p98
      %p100 = scmp.ne.s32.totalorder %s92, %s94
      %p101 = scmp.eq.s32.totalorder %s21, 2
      %p102 = por %p100, %p101
      %p103 = scmp.ne.s32.totalorder %s94, %s95
      %p104 = scmp.eq.s32.totalorder %s21, 0
      %p105 = por %p103, %p104
      %p106 = scmp.ne.s32.totalorder %s94, %s95
      %p107 = scmp.eq.s32.totalorder %s22, 2
      %p108 = por %p106, %p107
      %p110 = scmp.ne.s32.totalorder %s95, %s109
      %p111 = scmp.eq.s32.totalorder %s22, 0
      %p112 = por %p110, %p111
      %s114 = sadd.s32 %s113, 1
      %p117 = scmp.eq.s32.totalorder %s16, 2
      %p118 = scmp.ne.s32.totalorder %s113, %s115
      %p119 = scmp.eq.s32.totalorder %s16, 0
      %p120 = por %p118, %p119
      %p121 = scmp.ne.s32.totalorder %s113, %s115
      %p122 = scmp.eq.s32.totalorder %s21, 2
      %p123 = por %p121, %p122
      %p124 = scmp.ne.s32.totalorder %s115, %s116
      %p125 = scmp.eq.s32.totalorder %s21, 0
      %p126 = por %p124, %p125
      %p127 = scmp.ne.s32.totalorder %s115, %s116
      %p128 = scmp.eq.s32.totalorder %s22, 2
      %p129 = por %p127, %p128
      %p131 = scmp.ne.s32.totalorder %s116, %s130
      %p132 = scmp.eq.s32.totalorder %s22, 0
      %p133 = por %p131, %p132
      %s135 = sadd.s32 %s134, 1
      %p138 = scmp.eq.s32.totalorder %s16, 2
      %p139 = scmp.ne.s32.totalorder %s134, %s136
      %p140 = scmp.eq.s32.totalorder %s16, 0
      %p141 = por %p139, %p140
      %p142 = scmp.ne.s32.totalorder %s134, %s136
      %p143 = scmp.eq.s32.totalorder %s21, 2
      %p144 = por %p142, %p143
      %p145 = scmp.ne.s32.totalorder %s136, %s137
      %p146 = scmp.eq.s32.totalorder %s21, 0
      %p147 = por %p145, %p146
      %p148 = scmp.ne.s32.totalorder %s136, %s137
      %p149 = scmp.eq.s32.totalorder %s22, 2
      %p150 = por %p148, %p149
      %p152 = scmp.ne.s32.totalorder %s137, %s151
      %p153 = scmp.eq.s32.totalorder %s22, 0
      %p154 = por %p152, %p153
      %s156 = sadd.s32 %s155, 1
      %p159 = scmp.eq.s32.totalorder %s16, 2
      %p160 = scmp.ne.s32.totalorder %s155, %s157
      %p161 = scmp.eq.s32.totalorder %s16, 0
      %p162 = por %p160, %p161
      %p163 = scmp.ne.s32.totalorder %s155, %s157
      %p164 = scmp.eq.s32.totalorder %s21, 2
      %p165 = por %p163, %p164
      %p166 = scmp.ne.s32.totalorder %s157, %s158
      %p167 = scmp.eq.s32.totalorder %s21, 0
      %p168 = por %p166, %p167
      %p169 = scmp.ne.s32.totalorder %s157, %s158
      %p170 = scmp.eq.s32.totalorder %s22, 2
      %p171 = por %p169, %p170
      %p173 = scmp.ne.s32.totalorder %s158, %s172
      %p174 = scmp.eq.s32.totalorder %s22, 0
      %p175 = por %p173, %p174
      %s177 = sadd.s32 %s176, 1
      %p180 = scmp.eq.s32.totalorder %s16, 2
      %p181 = scmp.ne.s32.totalorder %s176, %s178
      %p182 = scmp.eq.s32.totalorder %s16, 0
      %p183 = por %p181, %p182
      %p184 = scmp.ne.s32.totalorder %s176, %s178
      %p185 = scmp.eq.s32.totalorder %s21, 2
      %p186 = por %p184, %p185
      %p187 = scmp.ne.s32.totalorder %s178, %s179
      %p188 = scmp.eq.s32.totalorder %s21, 0
      %p189 = por %p187, %p188
      %p190 = scmp.ne.s32.totalorder %s178, %s179
      %p191 = scmp.eq.s32.totalorder %s22, 2
      %p192 = por %p190, %p191
      %p194 = scmp.ne.s32.totalorder %s179, %s193
      %p195 = scmp.eq.s32.totalorder %s22, 0
      %p196 = por %p194, %p195
      %s197 = ssub.s32 %s23, %s35
      %s198 = ssub.s32 %s24, %s31
      %s199 = sor.u32 %s197, %s198
      %p200 = scmp.eq.s32.totalorder %s199, 0
      %s202 = sadd.s32 %s201, 1
      %s203 = scalar_select %p200, %s201, %s202
      %p206 = pneg %p200
      %p207 = scmp.eq.s32.totalorder %s16, 2
      %p208 = por %p206, %p207
      %p209 = scmp.ne.s32.totalorder %s201, %s204
      %p210 = scmp.eq.s32.totalorder %s16, 0
      %p211 = por %p209, %p210
      %p212 = scmp.ne.s32.totalorder %s201, %s204
      %p213 = scmp.eq.s32.totalorder %s21, 2
      %p214 = por %p212, %p213
      %p215 = scmp.ne.s32.totalorder %s204, %s205
      %p216 = scmp.eq.s32.totalorder %s21, 0
      %p217 = por %p215, %p216
      %p218 = scmp.ne.s32.totalorder %s204, %s205
      %p219 = scmp.eq.s32.totalorder %s22, 2
      %p220 = por %p218, %p219
      %p222 = scmp.ne.s32.totalorder %s205, %s221
      %p223 = scmp.eq.s32.totalorder %s22, 0
      %p224 = por %p222, %p223
      %p225 = scmp.le.s32.totalorder 1, %s16
      %p226 = scmp.lt.s32.totalorder %s16, 4
      %p227 = pnand %p225, %p226
      %p228 = pneg %p227
      // Predicated region
      $region9: #{datanet_forward.1} parent=5 // pred_check
        _
      $region10: #{datanet_forward.1} parent=5 // pred_check_branch
        %230 = sbr.rel (%p227) target = $region12
      $region11: #{datanet_forward.1} parent=5 // pred_region
        %s231 = ssub.s32 %s16, 1
        // Predicated region
        $region13: #{datanet_forward.1} parent=11 // pred_check
          %p232 = pneg %p105
        $region14: #{datanet_forward.1} parent=11 // pred_check_branch
          %234 = sbr.rel (%p232) target = $region16
        $region15: #{datanet_forward.1} parent=11 // pred_region
          _
        $region16: #{datanet_forward.1} parent=11 // pred_fallthru
          _
        // Predicated region
        $region17: #{datanet_forward.1} parent=11 // pred_check
          %p235 = pneg %p126
        $region18: #{datanet_forward.1} parent=11 // pred_check_branch
          %237 = sbr.rel (%p235) target = $region20
        $region19: #{datanet_forward.1} parent=11 // pred_region
          %s239 = ssub.s32 16, 16
          %240 = vsyncadd [#allocation3], %s239
          %s242 = sshll.u32 %s3, 4
          %s243 = int_to_ptr.vmem [resolvable:$true] %s242
          %245 = dma.vmem_to_smem %s243, 16, [#allocation2], [#allocation3]
        $region20: #{datanet_forward.1} parent=11 // pred_fallthru
          _
        // Predicated region
        $region21: #{datanet_forward.1} parent=11 // pred_check
          %p246 = pneg %p147
        $region22: #{datanet_forward.1} parent=11 // pred_check_branch
          %248 = sbr.rel (%p246) target = $region24
        $region23: #{datanet_forward.1} parent=11 // pred_region
          %s250 = ssub.s32 16, 16
          %251 = vsyncadd [#allocation5], %s250
          %s253 = sshll.u32 %s4, 4
          %s254 = int_to_ptr.vmem [resolvable:$true] %s253
          %256 = dma.vmem_to_smem %s254, 16, [#allocation4], [#allocation5]
        $region24: #{datanet_forward.1} parent=11 // pred_fallthru
          _
        // Predicated region
        $region25: #{datanet_forward.1} parent=11 // pred_check
          %p257 = pneg %p168
        $region26: #{datanet_forward.1} parent=11 // pred_check_branch
          %259 = sbr.rel (%p257) target = $region28
        $region27: #{datanet_forward.1} parent=11 // pred_region
          %s261 = ssub.s32 16, 16
          %262 = vsyncadd [#allocation5], %s261
          %s264 = sshll.u32 %s5, 4
          %s265 = int_to_ptr.vmem [resolvable:$true] %s264
          %267 = dma.vmem_to_smem %s265, 16, [#allocation6], [#allocation5]
        $region28: #{datanet_forward.1} parent=11 // pred_fallthru
          _
        // Predicated region
        $region29: #{datanet_forward.1} parent=11 // pred_check
          %p268 = pneg %p189
        $region30: #{datanet_forward.1} parent=11 // pred_check_branch
          %270 = sbr.rel (%p268) target = $region32
        $region31: #{datanet_forward.1} parent=11 // pred_region
          %s272 = ssub.s32 16, 16
          %273 = vsyncadd [#allocation8], %s272
          %s275 = sshll.u32 %s6, 4
          %s276 = int_to_ptr.vmem [resolvable:$true] %s275
          %278 = dma.vmem_to_smem %s276, 16, [#allocation7], [#allocation8]
        $region32: #{datanet_forward.1} parent=11 // pred_fallthru
          _
      $region12: #{datanet_forward.1} parent=5 // pred_fallthru
        _
      %p279 = scmp.lt.s32.totalorder %s16, 3
      // Predicated region
      $region33: #{datanet_forward.1} parent=5 // pred_check
        %p280 = pneg %p279
      $region34: #{datanet_forward.1} parent=5 // pred_check_branch
        %282 = sbr.rel (%p280) target = $region36
      $region35: #{datanet_forward.1} parent=5 // pred_region
        // Predicated region
        $region37: #{datanet_forward.1} parent=35 // pred_check
          %p283 = pneg %p50
        $region38: #{datanet_forward.1} parent=35 // pred_check_branch
          %285 = sbr.rel (%p283) target = $region40
        $region39: #{datanet_forward.1} parent=35 // pred_region
          %p286 = scmp.lt.s32.totalorder %s23, 2
          %s287 = scalar_select %p286, %s23, 2
          %p288 = scmp.lt.s32.totalorder %s24, 0
          %s289 = scalar_select %p288, %s24, 0
          %s290 = sadd.s32 %s289, %s287
          %s291 = smul.addr %s290, 8
          %s292 = scalar_lea.vmem %s0, %s291
        $region40: #{datanet_forward.1} parent=35 // pred_fallthru
          _
        // Predicated region
        $region41: #{datanet_forward.1} parent=35 // pred_check
          %p293 = pneg %p78
        $region42: #{datanet_forward.1} parent=35 // pred_check_branch
          %295 = sbr.rel (%p293) target = $region44
        $region43: #{datanet_forward.1} parent=35 // pred_region
          %p296 = scmp.lt.s32.totalorder %s23, 2
          %s297 = scalar_select %p296, %s23, 2
          %p298 = scmp.lt.s32.totalorder %s24, 0
          %s299 = scalar_select %p298, %s24, 0
          %s300 = sadd.s32 %s299, %s297
          %s301 = smul.addr %s300, 8
          %s302 = scalar_lea.vmem %s1, %s301
        $region44: #{datanet_forward.1} parent=35 // pred_fallthru
          _
      $region36: #{datanet_forward.1} parent=5 // pred_fallthru
        _
      %p303 = scmp.le.s32.totalorder 1, %s16
      %p304 = scmp.lt.s32.totalorder %s16, 4
      %p305 = pnand %p303, %p304
      %p306 = pneg %p305
      // Predicated region
      $region45: #{datanet_forward.1} parent=5 // pred_check
        _
      $region46: #{datanet_forward.1} parent=5 // pred_check_branch
        %308 = sbr.rel (%p305) target = $region48
      $region47: #{datanet_forward.1} parent=5 // pred_region
        %s309 = ssub.s32 %s16, 1
        // Predicated region
        $region49: #{datanet_forward.1} parent=47 // pred_check
          %p310 = pneg %p126
        $region50: #{datanet_forward.1} parent=47 // pred_check_branch
          %312 = sbr.rel (%p310) target = $region52
        $region51: #{datanet_forward.1} parent=47 // pred_region
          %313 = dma.done [#allocation3], 16
        $region52: #{datanet_forward.1} parent=47 // pred_fallthru
          _
        // Predicated region
        $region53: #{datanet_forward.1} parent=47 // pred_check
          %p314 = pneg %p147
        $region54: #{datanet_forward.1} parent=47 // pred_check_branch
          %316 = sbr.rel (%p314) target = $region56
        $region55: #{datanet_forward.1} parent=47 // pred_region
          %317 = dma.done [#allocation5], 16
        $region56: #{datanet_forward.1} parent=47 // pred_fallthru
          _
        // Predicated region
        $region57: #{datanet_forward.1} parent=47 // pred_check
          %p318 = pneg %p168
        $region58: #{datanet_forward.1} parent=47 // pred_check_branch
          %320 = sbr.rel (%p318) target = $region60
        $region59: #{datanet_forward.1} parent=47 // pred_region
          %321 = dma.done [#allocation5], 16
        $region60: #{datanet_forward.1} parent=47 // pred_fallthru
          _
        // Predicated region
        $region61: #{datanet_forward.1} parent=47 // pred_check
          %p322 = pneg %p189
        $region62: #{datanet_forward.1} parent=47 // pred_check_branch
          %324 = sbr.rel (%p322) target = $region64
        $region63: #{datanet_forward.1} parent=47 // pred_region
          %325 = dma.done [#allocation8], 16
        $region64: #{datanet_forward.1} parent=47 // pred_fallthru
          _
        %326 = sfence
        %p327 = scmp.lt.s32.totalorder %s25, 2
        %s328 = scalar_select %p327, %s25, 2
        %p329 = scmp.lt.s32.totalorder %s26, 0
        %s330 = scalar_select %p329, %s26, 0
        %s331 = sadd.s32 %s330, %s328
        %s332 = smul.addr %s331, 8
        %s333 = scalar_lea.vmem %s0, %s332
        %p334 = pneg %p56
        %p335 = pneg %p53
        %p336 = scmp.lt.s32.totalorder %s25, 2
        %s337 = scalar_select %p336, %s25, 2
        %p338 = scmp.lt.s32.totalorder %s26, 0
        %s339 = scalar_select %p338, %s26, 0
        %s340 = sadd.s32 %s339, %s337
        %s341 = smul.addr %s340, 8
        %s342 = scalar_lea.vmem %s1, %s341
        %p343 = pneg %p84
        %p344 = pneg %p81
        %p345 = pneg %p105
        %p346 = pneg %p102
        %p347 = pneg %p126
        %p348 = pneg %p123
        %p349 = pneg %p147
        %p350 = pneg %p144
        %p351 = pneg %p168
        %p352 = pneg %p165
        %p353 = pneg %p189
        %p354 = pneg %p186
        %p355 = pneg %p217
        %p356 = pneg %p214
        %p357 = scmp.lt.s32.totalorder %s25, 2
        %s358 = scalar_select %p357, %s25, 2
        %p359 = scmp.lt.s32.totalorder %s26, 0
        %s360 = scalar_select %p359, %s26, 0
        %s361 = sadd.s32 %s360, %s358
        %s362 = smul.addr %s361, 8
        %s363 = scalar_lea.vmem %s7, %s362
        %p364 = scmp.lt.s32.totalorder %s25, 2
        %s365 = scalar_select %p364, %s25, 2
        %p366 = scmp.lt.s32.totalorder %s26, 0
        %s367 = scalar_select %p366, %s26, 0
        %s368 = sadd.s32 %s367, %s365
        %s369 = smul.addr %s368, 8
        %s370 = scalar_lea.vmem %s0, %s369
        %p371 = scmp.lt.s32.totalorder %s25, 2
        %s372 = scalar_select %p371, %s25, 2
        %p373 = scmp.lt.s32.totalorder %s26, 0
        %s374 = scalar_select %p373, %s26, 0
        %s375 = sadd.s32 %s374, %s372
        %s376 = smul.addr %s375, 8
        %s377 = scalar_lea.vmem %s1, %s376
        %p378 = scmp.lt.s32.totalorder %s25, 2
        %s379 = scalar_select %p378, %s25, 2
        %p380 = scmp.lt.s32.totalorder %s26, 0
        %s381 = scalar_select %p380, %s26, 0
        %s382 = sadd.s32 %s381, %s379
        %s383 = smul.addr %s382, 8
        %s384 = scalar_lea.vmem %s7, %s383
        %s385 = smul.u32 %s26, 8
        %s386 = scalar_lea.vmem %s2, %s385
        %v387 = vld [vmem:[%s386] sm:$0xff]
        %s388 = sld [smem:[#allocation7 + %s25]]
        %p389 = scmp.eq.s32.totalorder %s388, 1
        // Predicated region
        $region65: #{datanet_forward.1} parent=47 // pred_check
          %p390 = pneg %p389
        $region66: #{datanet_forward.1} parent=47 // pred_check_branch
          %392 = sbr.rel (%p390) target = $region68
        $region67: #{datanet_forward.1} parent=47 // pred_region
          %s393 = sld [smem:[#allocation2 + %s25]]
          %s394 = sld [smem:[#allocation4 + %s25]]
          %s395 = sld [smem:[#allocation6 + %s25]]
          %s396 = ssub.f32 %s395, %s394
          %v397 = vstv %s396
          %v398 = vmul.f32 %v387, %v397
          %v399 = vstv %s394
          %v400 = vadd.f32 %v399, %v398
          %v401 = vld [vmem:[%s377] sm:$0xff]
          %v402 = vld [vmem:[%s370] sm:$0xff]
          %v403 = vstv %s393
          %v404 = vmul.f32 %v403, %v402
          %v405 = vadd.f32 %v401, %v404
          %v406 = vmul.f32 %v405, %v400
          %407 = vst [vmem:[%s384] sm:$0xff] %v406
        $region68: #{datanet_forward.1} parent=47 // pred_fallthru
          _
        %p408 = scmp.eq.s32.totalorder %s388, 0
        // Predicated region
        $region69: #{datanet_forward.1} parent=47 // pred_check
          %p409 = pneg %p408
        $region70: #{datanet_forward.1} parent=47 // pred_check_branch
          %411 = sbr.rel (%p409) target = $region72
        $region71: #{datanet_forward.1} parent=47 // pred_region
          %v412 = vld [vmem:[%s370] sm:$0xff]
          %v413 = vld [vmem:[%s377] sm:$0xff]
          %v414 = vsub.f32 %v413, %v412
          %v415 = vmul.f32 %v387, %v414
          %v416 = vadd.f32 %v412, %v415
          %417 = vst [vmem:[%s384] sm:$0xff] %v416
        $region72: #{datanet_forward.1} parent=47 // pred_fallthru
          _
        %p418 = scmp.lt.s32.totalorder %s388, 0
        // Predicated region
        $region73: #{datanet_forward.1} parent=47 // pred_check
          %p419 = pneg %p418
        $region74: #{datanet_forward.1} parent=47 // pred_check_branch
          %421 = sbr.rel (%p419) target = $region76
        $region75: #{datanet_forward.1} parent=47 // pred_region
          %422 = vst [vmem:[%s384] sm:$0xff] 0.0
        $region76: #{datanet_forward.1} parent=47 // pred_fallthru
          _
        %p423 = scmp.lt.s32.totalorder %s25, 2
        %s424 = scalar_select %p423, %s25, 2
        %p425 = scmp.lt.s32.totalorder %s26, 0
        %s426 = scalar_select %p425, %s26, 0
        %s427 = sadd.s32 %s426, %s424
        %s428 = smul.addr %s427, 8
        %s429 = scalar_lea.vmem %s7, %s428
        // Predicated region
        $region77: #{datanet_forward.1} parent=47 // pred_check
          %p430 = pneg %p214
        $region78: #{datanet_forward.1} parent=47 // pred_check_branch
          %432 = sbr.rel (%p430) target = $region80
        $region79: #{datanet_forward.1} parent=47 // pred_region
          _
        $region80: #{datanet_forward.1} parent=47 // pred_fallthru
          _
      $region48: #{datanet_forward.1} parent=5 // pred_fallthru
        _
      %p433 = scmp.le.s32.totalorder 2, %s16
      // Predicated region
      $region81: #{datanet_forward.1} parent=5 // pred_check
        %p434 = pneg %p433
      $region82: #{datanet_forward.1} parent=5 // pred_check_branch
        %436 = sbr.rel (%p434) target = $region84
      $region83: #{datanet_forward.1} parent=5 // pred_region
        %s437 = ssub.s32 %s16, 2
        // Predicated region
        $region85: #{datanet_forward.1} parent=83 // pred_check
          %p438 = pneg %p220
        $region86: #{datanet_forward.1} parent=83 // pred_check_branch
          %440 = sbr.rel (%p438) target = $region88
        $region87: #{datanet_forward.1} parent=83 // pred_region
          %p441 = scmp.lt.s32.totalorder %s27, 2
          %s442 = scalar_select %p441, %s27, 2
          %p443 = scmp.lt.s32.totalorder %s28, 0
          %s444 = scalar_select %p443, %s28, 0
          %s445 = sadd.s32 %s444, %s442
          %s446 = smul.addr %s445, 8
          %s447 = scalar_lea.vmem %s7, %s446
        $region88: #{datanet_forward.1} parent=83 // pred_fallthru
          _
      $region84: #{datanet_forward.1} parent=5 // pred_fallthru
        _
    $region6: #{datanet_forward.1} parent=1 // loop_footer
      %s20 = sadd.s32 1, %s16
    $region7: #{datanet_forward.1} parent=1 // loop_footer_branch
      %15 = sbr.rel target = $region3
    $region8: #{datanet_forward.1} parent=1 // loop_exit
      _
    %448 = vsyncpa [#allocation3], 1
    %s449 = scalar_lea.sflag [#allocation3], 1
    %450 = vsyncpa %s449, 1
    %451 = vsyncpa [#allocation5], 1
    %452 = vsyncpa [#allocation8], 1

</llo_original>
